<compile_context>
chip_gen: v5e
topology: v5e:2x2
jax: 0.10.0
libtpu: 0.0.40
codegen_flags: <defaults>
</compile_context>

<pallas_src>
import jax
import jax.numpy as jnp
from jax.experimental import pallas as pl
from jax.experimental.pallas import tpu as pltpu


def _cdiv(a, b):
    return -(-a // b)


def _ge_kernel(x_ref, w_ref, shift_ref, o_ref):
    # x_ref:     (TB, TC, HW)  input tile (f32 or bf16)
    # w_ref:     (TC, HW)      depthwise conv weight with BN scale folded in (f32)
    # shift_ref: (TC, 1)       folded conv-bias + BN shift (f32)
    # o_ref:     (TB, TC, HW)  output tile (same dtype as x)
    x = x_ref[...]
    xf = x.astype(jnp.float32)                                  # gate math in f32

    # Depthwise conv with a full-extent kernel == per-channel weighted sum over the
    # spatial (lane) axis.  keepdims keeps C on sublanes -> no relayout for the gate.
    s = jnp.sum(xf * w_ref[...], axis=-1, keepdims=True)        # (TB, TC, 1)
    gate = jax.nn.sigmoid(s + shift_ref[...])                   # (TB, TC, 1), f32

    # Rescale in the input dtype: on v6e/v7x a bf16 tile stays in packed 16x128 vregs
    # and the f32 upcast is only live across the reduction.
    o_ref[...] = (x * gate.astype(x.dtype)).astype(o_ref.dtype)


def _num_tensorcores():
    """Heuristic: v7x has 2 TensorCores per chip; earlier generations have 1."""
    try:
        kind = jax.devices()[0].device_kind.lower()
    except Exception:
        return 1
    return 2 if "v7" in kind else 1


def _vmem_limit_bytes():
    """~48 MiB on v7x (64 MiB physical), ~100 MiB on v5e/v6e (128 MiB physical)."""
    try:
        cap = int(pltpu.get_tpu_info().vmem_capacity_bytes)
    except Exception:
        cap = 64 << 20  # conservative fallback (v7x per-core VMEM)
    return int(max(min(cap - (16 << 20), 100 << 20), 32 << 20))


def _pick_tiles(B, C, HW, itemsize, vmem_limit, num_cores):
    """Pick (TB, TC): largest batch tile fitting VMEM; split only where it helps."""
    slack = 4 << 20                                   # weights / shift / compiler scratch
    budget = max(vmem_limit - slack, 1 << 20)
    per_row = HW * (4 * itemsize + 4)                 # 2x in + 2x out bufs + f32 temp
    TB = max(1, min(B, budget // max(C * per_row, 1)))
    TC = C
    if TB == 1 and C * per_row > budget:
        # Huge channel count: tile channels so one (1, TC, HW) step fits VMEM.
        TC = min(C, max(8, (budget // per_row) // 8 * 8))
    elif num_cores > 1 and _cdiv(B, TB) < num_cores:
        # v7x only: keep both TensorCores busy (split batch first, else channels).
        if B >= num_cores:
            TB = _cdiv(B, num_cores)
        elif C > 8:
            TC = min(C, ((_cdiv(C, 2) + 7) // 8) * 8)
    return TB, TC


def ge_layer(x, params, eps=1e-5):
    """x: (B, C, H, W); params: depthwise conv weight/bias + BN params.

    Requires H == W == conv kernel size (as in GENet: the conv covers the whole
    feature map and produces a 1x1 gate per channel)."""
    B, C, H, W = x.shape
    w_dw = params["w_dw"]                       # (C, K, K)
    K = w_dw.shape[-1]
    assert H == K and W == K, "GELayer expects spatial size == conv kernel size"
    HW = H * W

    # Fold conv bias + BatchNorm (inference) into the weight and a per-channel shift:
    #   BN(sum(x*w)+b) = sum(x * (w*scale)) + ((b - rm)*scale + beta)
    scale = (params["gamma"] / jnp.sqrt(params["rv"] + eps)).astype(jnp.float32)
    w2 = w_dw.reshape(C, HW).astype(jnp.float32) * scale[:, None]
    shift = ((params["b_dw"] - params["rm"]) * scale + params["beta"]).astype(jnp.float32)
    shift = shift.reshape(C, 1)

    x2 = x.reshape(B, C, HW)                    # free metadata reshape, no padding

    vmem_limit = _vmem_limit_bytes()
    TB, TC = _pick_tiles(B, C, HW, jnp.dtype(x.dtype).itemsize, vmem_limit,
                         _num_tensorcores())
    grid = (_cdiv(B, TB), _cdiv(C, TC))         # partial last blocks are masked

    out = pl.pallas_call(
        _ge_kernel,
        out_shape=jax.ShapeDtypeStruct((B, C, HW), x.dtype),
        grid_spec=pltpu.PrefetchScalarGridSpec(
            num_scalar_prefetch=0,
            grid=grid,
            in_specs=[
                pl.BlockSpec((TB, TC, HW), lambda i, j: (i, j, 0)),
                pl.BlockSpec((TC, HW), lambda i, j: (j, 0)),
                pl.BlockSpec((TC, 1), lambda i, j: (j, 0)),
            ],
            out_specs=pl.BlockSpec((TB, TC, HW), lambda i, j: (i, j, 0)),
        ),
        compiler_params=pltpu.CompilerParams(
            dimension_semantics=("parallel", "parallel"),
            vmem_limit_bytes=vmem_limit,
        ),
    )(x2, w2, shift)

    return out.reshape(B, C, H, W)


def init_params(key, channel, kernel_size):
    """Deterministic params mimicking PyTorch defaults (Conv2d depthwise + BatchNorm2d)."""
    keys = jax.random.split(key, 6)
    bound = 1.0 / float(kernel_size)            # 1/sqrt(fan_in), fan_in = K*K (depthwise)
    w_dw = jax.random.uniform(keys[0], (channel, kernel_size, kernel_size),
                              jnp.float32, -bound, bound)
    b_dw = jax.random.uniform(keys[1], (channel,), jnp.float32, -bound, bound)
    gamma = jax.random.uniform(keys[2], (channel,), jnp.float32, 0.5, 1.5)
    beta = jax.random.uniform(keys[3], (channel,), jnp.float32, -0.5, 0.5)
    rm = jax.random.normal(keys[4], (channel,), jnp.float32) * 0.1
    rv = jax.random.uniform(keys[5], (channel,), jnp.float32, 0.5, 1.5)
    return dict(w_dw=w_dw, b_dw=b_dw, gamma=gamma, beta=beta, rm=rm, rv=rv)


def reference_gelayer(x, p, eps=1e-5):
    """Pure-JAX reference reproducing the PyTorch forward (BN in eval mode)."""
    xf = x.astype(jnp.float32)
    g = jnp.einsum("bchw,chw->bc", xf, p["w_dw"]) + p["b_dw"]   # depthwise KxK conv -> 1x1
    g = (g - p["rm"]) / jnp.sqrt(p["rv"] + eps) * p["gamma"] + p["beta"]
    gate = jax.nn.sigmoid(g)
    return xf * gate[:, :, None, None]


if __name__ == "__main__":
    # layer_idx=3 in the PyTorch module -> kernel_size = 14, so spatial = 14x14.
    B, C = 2, 32
    K = 14
    H = W = K

    key = jax.random.PRNGKey(0)
    kx, kp = jax.random.split(key)
    x = jax.random.normal(kx, (B, C, H, W), jnp.float32)
    params = init_params(kp, C, K)

    out = jax.block_until_ready(ge_layer(x, params))
    ref = reference_gelayer(x, params)
    assert out.shape == (B, C, H, W)
    assert jnp.allclose(out, ref, atol=1e-4, rtol=1e-4), (
        f"max err {jnp.max(jnp.abs(out - ref))}")

    # bf16 transfer path (halves HBM traffic); gate math stays f32, rescale in bf16.
    out_bf16 = jax.block_until_ready(ge_layer(x.astype(jnp.bfloat16), params))
    assert out_bf16.dtype == jnp.bfloat16
    assert jnp.allclose(out_bf16.astype(jnp.float32), ref, atol=6e-2, rtol=6e-2), (
        f"bf16 max err {jnp.max(jnp.abs(out_bf16.astype(jnp.float32) - ref))}")

    print("KERNEL_OK")
</pallas_src>

<mosaic_0001>
module attributes {stable_mosaic.version = 11 : i64} {
  func.func @_ge_kernel(%arg0: i32, %arg1: i32, %arg2: memref<2x32x196xf32, #tpu.memory_space<vmem>>, %arg3: memref<32x196xf32, #tpu.memory_space<vmem>>, %arg4: memref<32x1xf32, #tpu.memory_space<vmem>>, %arg5: memref<2x32x196xf32, #tpu.memory_space<vmem>>) attributes {dimension_semantics = [#tpu.dimension_semantics<parallel>, #tpu.dimension_semantics<parallel>], iteration_bounds = array<i64: 1, 1>, scalar_prefetch = 0 : i64, scratch_operands = 0 : i64, tpu.core_type = #tpu.core_type<tc>, window_params = [{transform_indices = @transform_0, window_bounds = array<i64: 2, 32, 196>}, {transform_indices = @transform_1, window_bounds = array<i64: 32, 196>}, {transform_indices = @transform_2, window_bounds = array<i64: 32, 1>}, {transform_indices = @transform_3, window_bounds = array<i64: 2, 32, 196>}]} {
    %c0 = arith.constant 0 : index
    %c0_0 = arith.constant 0 : index
    %c0_1 = arith.constant 0 : index
    %0 = vector.load %arg2[%c0, %c0_0, %c0_1] : memref<2x32x196xf32, #tpu.memory_space<vmem>>, vector<2x32x196xf32>
    %c0_2 = arith.constant 0 : index
    %c0_3 = arith.constant 0 : index
    %1 = vector.load %arg3[%c0_2, %c0_3] : memref<32x196xf32, #tpu.memory_space<vmem>>, vector<32x196xf32>
    %2 = vector.shape_cast %1 : vector<32x196xf32> to vector<1x32x196xf32>
    %3 = vector.broadcast %2 : vector<1x32x196xf32> to vector<2x32x196xf32>
    %4 = arith.mulf %0, %3 : vector<2x32x196xf32>
    %cst = arith.constant dense<0.000000e+00> : vector<2x32xf32>
    %5 = vector.multi_reduction <add>, %4, %cst [2] : vector<2x32x196xf32> to vector<2x32xf32>
    %6 = vector.shape_cast %5 : vector<2x32xf32> to vector<2x32x1xf32>
    %c0_4 = arith.constant 0 : index
    %c0_5 = arith.constant 0 : index
    %7 = vector.load %arg4[%c0_4, %c0_5] : memref<32x1xf32, #tpu.memory_space<vmem>>, vector<32x1xf32>
    %8 = vector.shape_cast %7 : vector<32x1xf32> to vector<1x32x1xf32>
    %9 = vector.broadcast %8 : vector<1x32x1xf32> to vector<2x32x1xf32>
    %10 = arith.addf %6, %9 : vector<2x32x1xf32>
    %11 = arith.negf %10 : vector<2x32x1xf32>
    %12 = math.exp %11 : vector<2x32x1xf32>
    %cst_6 = arith.constant 1.000000e+00 : f32
    %13 = vector.broadcast %cst_6 : f32 to vector<2x32x1xf32>
    %14 = arith.addf %13, %12 : vector<2x32x1xf32>
    %15 = arith.divf %13, %14 : vector<2x32x1xf32>
    %16 = vector.broadcast %15 : vector<2x32x1xf32> to vector<2x32x196xf32>
    %17 = arith.mulf %0, %16 : vector<2x32x196xf32>
    %c0_7 = arith.constant 0 : index
    %c0_8 = arith.constant 0 : index
    %c0_9 = arith.constant 0 : index
    %18 = vector.load %arg5[%c0_7, %c0_8, %c0_9] : memref<2x32x196xf32, #tpu.memory_space<vmem>>, vector<2x32x196xf32>
    tpu.vector_store %arg5[%c0_7, %c0_8, %c0_9], %17 {strides = array<i32>} : memref<2x32x196xf32, #tpu.memory_space<vmem>>, vector<2x32x196xf32>,
    return
  }
  func.func @transform_0(%arg0: i32, %arg1: i32) -> (i32, i32, i32) {
    %c0_i32 = arith.constant 0 : i32
    %c0_i32_0 = arith.constant 0 : i32
    return %arg0, %arg1, %c0_i32 : i32, i32, i32
  }
  func.func @transform_1(%arg0: i32, %arg1: i32) -> (i32, i32) {
    %c0_i32 = arith.constant 0 : i32
    %c0_i32_0 = arith.constant 0 : i32
    return %arg1, %c0_i32 : i32, i32
  }
  func.func @transform_2(%arg0: i32, %arg1: i32) -> (i32, i32) {
    %c0_i32 = arith.constant 0 : i32
    %c0_i32_0 = arith.constant 0 : i32
    return %arg1, %c0_i32 : i32, i32
  }
  func.func @transform_3(%arg0: i32, %arg1: i32) -> (i32, i32, i32) {
    %c0_i32 = arith.constant 0 : i32
    %c0_i32_0 = arith.constant 0 : i32
    return %arg0, %arg1, %c0_i32 : i32, i32, i32
  }
}

</mosaic_0001>

<llo_original>
// kernel: tpu_custom_call.1
$region0: #{tpu_custom_call.1}
  #allocation0 [shape = 'u32[]', space=smem, size = 0x4, offset = 0x4, fixed_abs, tag = 'smem constant byte address 0x4 - core index']
  #allocation1 [shape = 'u32[72,128]{1,0:T(1,128)}', space=vmem, size = 0x9000, scoped, tag = 'internal scratch']
  %s0 = inlined_call_operand.hbm [shape: f32[2,32,196], index: 0, kind: input, shape index: {}]
  %s1 = inlined_call_operand.hbm [shape: f32[32,196], index: 1, kind: input, shape index: {}]
  %s2 = inlined_call_operand.vmem [shape: f32[32,1], index: 2, kind: input, shape index: {}]
  %s3 = inlined_call_operand.hbm [shape: f32[2,32,196], index: 3, kind: output, shape index: {}]
  %s4 = sld [smem:[#allocation0]]
  $region30: #{tpu_custom_call.1} parent=0
    _
  %s6 = ssub.s32 1, %s4
  %s7 = scalar_select 0, %s6, %s4
  $region1: #{tpu_custom_call.1} parent=0
    #allocation2 [shape = 'u8[65536]{0}', space=vmem, size = 0x10000, scoped, tag = 'input window, operand 0, single buffered']
    #allocation3 [shape = 's32[1]{0}', space=sflag, size = 0x4, scoped, tag = 'scoped memory for tpu_custom_call.1']
    #allocation4 [shape = 's32[1]{0}', space=sflag, size = 0x4, scoped, tag = 'scoped memory for tpu_custom_call.1']
    #allocation5 [shape = 'u8[32768]{0}', space=vmem, size = 0x8000, scoped, tag = 'input window, operand 1, single buffered']
    #allocation6 [shape = 's32[1]{0}', space=sflag, size = 0x4, scoped, tag = 'scoped memory for tpu_custom_call.1']
    #allocation7 [shape = 'u8[65536]{0}', space=vmem, size = 0x10000, scoped, tag = 'output window, operand 0, single buffered']
    %8 = vsyncpa [#allocation3], 0
    %9 = vsyncpa [#allocation6], 0
    %10 = vsyncpa [#allocation4], 0
    // Predicated region
    $region2: #{tpu_custom_call.1} parent=1 // pred_check
      _
    $region3: #{tpu_custom_call.1} parent=1 // pred_check_branch
      %12 = sbr.rel (0) target = $region5
    $region4: #{tpu_custom_call.1} parent=1 // pred_region
      %14 = vsyncadd [#allocation3], 0
      %s15 = sshll.u32 %s0, 4
      %s16 = int_to_ptr.hbm [resolvable:$true] %s15
      %s17 = sshll.u32 [#allocation2], 4
      %s18 = int_to_ptr.vmem [resolvable:$true] %s17
      %23 = dma.hbm_to_vmem [thread:$0]  %s16, 2048, %s18, [#allocation3], 256, 256, 16
    $region5: #{tpu_custom_call.1} parent=1 // pred_fallthru
      _
    // Predicated region
    $region6: #{tpu_custom_call.1} parent=1 // pred_check
      _
    $region7: #{tpu_custom_call.1} parent=1 // pred_check_branch
      %25 = sbr.rel (0) target = $region9
    $region8: #{tpu_custom_call.1} parent=1 // pred_region
      %27 = vsyncadd [#allocation6], 0
      %s28 = sshll.u32 %s1, 4
      %s29 = int_to_ptr.hbm [resolvable:$true] %s28
      %s30 = sshll.u32 [#allocation5], 4
      %s31 = int_to_ptr.vmem [resolvable:$true] %s30
      %36 = dma.hbm_to_vmem [thread:$0]  %s29, 1024, %s31, [#allocation6], 256, 256, 16
    $region9: #{tpu_custom_call.1} parent=1 // pred_fallthru
      _
    // Predicated region
    $region10: #{tpu_custom_call.1} parent=1 // pred_check
      _
    $region11: #{tpu_custom_call.1} parent=1 // pred_check_branch
      %38 = sbr.rel (0) target = $region13
    $region12: #{tpu_custom_call.1} parent=1 // pred_region
      _
    $region13: #{tpu_custom_call.1} parent=1 // pred_fallthru
      _
    // Predicated region
    $region14: #{tpu_custom_call.1} parent=1 // pred_check
      _
    $region15: #{tpu_custom_call.1} parent=1 // pred_check_branch
      %40 = sbr.rel (0) target = $region17
    $region16: #{tpu_custom_call.1} parent=1 // pred_region
      %42 = dma.done [#allocation3], 2048
    $region17: #{tpu_custom_call.1} parent=1 // pred_fallthru
      _
    // Predicated region
    $region18: #{tpu_custom_call.1} parent=1 // pred_check
      _
    $region19: #{tpu_custom_call.1} parent=1 // pred_check_branch
      %44 = sbr.rel (0) target = $region21
    $region20: #{tpu_custom_call.1} parent=1 // pred_region
      %46 = dma.done [#allocation6], 1024
    $region21: #{tpu_custom_call.1} parent=1 // pred_fallthru
      _
    %v47 = vld [vmem:[#allocation2] sm:$0xff]
    %v48 = vld [vmem:[#allocation2 + $0x8] sm:$0xff]
    %v49 = vld [vmem:[#allocation2 + $0x10] sm:$0xff]
    %v50 = vld [vmem:[#allocation2 + $0x18] sm:$0xff]
    %v51 = vld [vmem:[#allocation2 + $0x20] sm:$0xff]
    %v52 = vld [vmem:[#allocation2 + $0x28] sm:$0xff]
    %v53 = vld [vmem:[#allocation2 + $0x30] sm:$0xff]
    %v54 = vld [vmem:[#allocation2 + $0x38] sm:$0xff]
    %v55 = vld [vmem:[#allocation2 + $0x40] sm:$0xff]
    %v56 = vld [vmem:[#allocation2 + $0x48] sm:$0xff]
    %v57 = vld [vmem:[#allocation2 + $0x50] sm:$0xff]
    %v58 = vld [vmem:[#allocation2 + $0x58] sm:$0xff]
    %v59 = vld [vmem:[#allocation2 + $0x60] sm:$0xff]
    %v60 = vld [vmem:[#allocation2 + $0x68] sm:$0xff]
    %v61 = vld [vmem:[#allocation2 + $0x70] sm:$0xff]
    %v62 = vld [vmem:[#allocation2 + $0x78] sm:$0xff]
    %v63 = vld [vmem:[#allocation5] sm:$0xff]
    %v64 = vld [vmem:[#allocation5 + $0x8] sm:$0xff]
    %v65 = vld [vmem:[#allocation5 + $0x10] sm:$0xff]
    %v66 = vld [vmem:[#allocation5 + $0x18] sm:$0xff]
    %v67 = vld [vmem:[#allocation5 + $0x20] sm:$0xff]
    %v68 = vld [vmem:[#allocation5 + $0x28] sm:$0xff]
    %v69 = vld [vmem:[#allocation5 + $0x30] sm:$0xff]
    %v70 = vld [vmem:[#allocation5 + $0x38] sm:$0xff]
    %v71 = vmul.f32 %v47, %v63
    %v72 = vmul.f32 %v48, %v64
    %v73 = vmul.f32 %v49, %v65
    %v74 = vmul.f32 %v50, %v66
    %v75 = vmul.f32 %v51, %v67
    %v76 = vmul.f32 %v52, %v68
    %v77 = vmul.f32 %v53, %v69
    %v78 = vmul.f32 %v54, %v70
    %v79 = vmul.f32 %v55, %v63
    %v80 = vmul.f32 %v56, %v64
    %v81 = vmul.f32 %v57, %v65
    %v82 = vmul.f32 %v58, %v66
    %v83 = vmul.f32 %v59, %v67
    %v84 = vmul.f32 %v60, %v68
    %v85 = vmul.f32 %v61, %v69
    %v86 = vmul.f32 %v62, %v70
    %vm87 = vcmask 556032
    %v88 = vsel %vm87, %v72, 0.0
    %v89 = vadd.f32 %v71, %v88
    %90 = vadd.xlane.f32.xlu0 %v89
    %v91 = vpop.xlane.xlu0 %90
    %v92 = vsel %vm87, %v74, 0.0
    %v93 = vadd.f32 %v73, %v92
    %94 = vadd.xlane.f32.xlu0 %v93
    %v95 = vpop.xlane.xlu0 %94
    %v96 = vsel %vm87, %v76, 0.0
    %v97 = vadd.f32 %v75, %v96
    %98 = vadd.xlane.f32.xlu0 %v97
    %v99 = vpop.xlane.xlu0 %98
    %v100 = vsel %vm87, %v78, 0.0
    %v101 = vadd.f32 %v77, %v100
    %102 = vadd.xlane.f32.xlu0 %v101
    %v103 = vpop.xlane.xlu0 %102
    %v104 = vsel %vm87, %v80, 0.0
    %v105 = vadd.f32 %v79, %v104
    %106 = vadd.xlane.f32.xlu0 %v105
    %v107 = vpop.xlane.xlu0 %106
    %v108 = vsel %vm87, %v82, 0.0
    %v109 = vadd.f32 %v81, %v108
    %110 = vadd.xlane.f32.xlu0 %v109
    %v111 = vpop.xlane.xlu0 %110
    %v112 = vsel %vm87, %v84, 0.0
    %v113 = vadd.f32 %v83, %v112
    %114 = vadd.xlane.f32.xlu0 %v113
    %v115 = vpop.xlane.xlu0 %114
    %v116 = vsel %vm87, %v86, 0.0
    %v117 = vadd.f32 %v85, %v116
    %118 = vadd.xlane.f32.xlu0 %v117
    %v119 = vpop.xlane.xlu0 %118
    %v120 = vld [vmem:[%s2] sm:$0xff]
    %v121 = vld [vmem:[%s2 + $0x8] sm:$0xff]
    %v122 = vld [vmem:[%s2 + $0x10] sm:$0xff]
    %v123 = vld [vmem:[%s2 + $0x18] sm:$0xff]
    %v124 = vadd.f32 %v91, %v120
    %v125 = vadd.f32 %v95, %v121
    %v126 = vadd.f32 %v99, %v122
    %v127 = vadd.f32 %v103, %v123
    %v128 = vadd.f32 %v107, %v120
    %v129 = vadd.f32 %v111, %v121
    %v130 = vadd.f32 %v115, %v122
    %v131 = vadd.f32 %v119, %v123
    %v132 = vxor.u32 %v124, 2147483648
    %v133 = vxor.u32 %v125, 2147483648
    %v134 = vxor.u32 %v126, 2147483648
    %v135 = vxor.u32 %v127, 2147483648
    %v136 = vxor.u32 %v128, 2147483648
    %v137 = vxor.u32 %v129, 2147483648
    %v138 = vxor.u32 %v130, 2147483648
    %v139 = vxor.u32 %v131, 2147483648
    %v140 = vmul.f32 %v132, 1.442695
    %v141 = vpow.pop %v140
    %v142 = vmul.f32 %v133, 1.442695
    %v143 = vpow.pop %v142
    %v144 = vmul.f32 %v134, 1.442695
    %v145 = vpow.pop %v144
    %v146 = vmul.f32 %v135, 1.442695
    %v147 = vpow.pop %v146
    %v148 = vmul.f32 %v136, 1.442695
    %v149 = vpow.pop %v148
    %v150 = vmul.f32 %v137, 1.442695
    %v151 = vpow.pop %v150
    %v152 = vmul.f32 %v138, 1.442695
    %v153 = vpow.pop %v152
    %v154 = vmul.f32 %v139, 1.442695
    %v155 = vpow.pop %v154
    %v156 = vadd.f32 %v141, 1.0
    %v157 = vadd.f32 %v143, 1.0
    %v158 = vadd.f32 %v145, 1.0
    %v159 = vadd.f32 %v147, 1.0
    %v160 = vadd.f32 %v149, 1.0
    %v161 = vadd.f32 %v151, 1.0
    %v162 = vadd.f32 %v153, 1.0
    %v163 = vadd.f32 %v155, 1.0
    %v164 = vrcp.pop %v156
    %v165 = vmul.f32 %v156, %v164
    %v166 = vsub.f32 1.0, %v165
    %v167 = vmul.f32 %v164, %v166
    %v168 = vadd.f32 %v164, %v167
    %vm169 = vweird.f32 %v156
    %vm170 = vweird.f32 %v164
    %vm171 = vmor %vm169, %vm170
    %v172 = vsel %vm171, %v164, %v168
    %v173 = vand.u32 2147483647, %v156
    %vm174 = vcmp.eq.f32.partialorder %v173, 8.507059e+37
    %v175 = vand.u32 %v156, 2147483648
    %v176 = vor.u32 1.1754944e-38, %v175
    %v177 = vsel %vm174, %v176, %v172
    %v178 = vmul.f32 1.0, %v177
    %v179 = vrcp.pop %v157
    %v180 = vmul.f32 %v157, %v179
    %v181 = vsub.f32 1.0, %v180
    %v182 = vmul.f32 %v179, %v181
    %v183 = vadd.f32 %v179, %v182
    %vm184 = vweird.f32 %v157
    %vm185 = vweird.f32 %v179
    %vm186 = vmor %vm184, %vm185
    %v187 = vsel %vm186, %v179, %v183
    %v188 = vand.u32 2147483647, %v157
    %vm189 = vcmp.eq.f32.partialorder %v188, 8.507059e+37
    %v190 = vand.u32 %v157, 2147483648
    %v191 = vor.u32 1.1754944e-38, %v190
    %v192 = vsel %vm189, %v191, %v187
    %v193 = vmul.f32 1.0, %v192
    %v194 = vrcp.pop %v158
    %v195 = vmul.f32 %v158, %v194
    %v196 = vsub.f32 1.0, %v195
    %v197 = vmul.f32 %v194, %v196
    %v198 = vadd.f32 %v194, %v197
    %vm199 = vweird.f32 %v158
    %vm200 = vweird.f32 %v194
    %vm201 = vmor %vm199, %vm200
    %v202 = vsel %vm201, %v194, %v198
    %v203 = vand.u32 2147483647, %v158
    %vm204 = vcmp.eq.f32.partialorder %v203, 8.507059e+37
    %v205 = vand.u32 %v158, 2147483648
    %v206 = vor.u32 1.1754944e-38, %v205
    %v207 = vsel %vm204, %v206, %v202
    %v208 = vmul.f32 1.0, %v207
    %v209 = vrcp.pop %v159
    %v210 = vmul.f32 %v159, %v209
    %v211 = vsub.f32 1.0, %v210
    %v212 = vmul.f32 %v209, %v211
    %v213 = vadd.f32 %v209, %v212
    %vm214 = vweird.f32 %v159
    %vm215 = vweird.f32 %v209
    %vm216 = vmor %vm214, %vm215
    %v217 = vsel %vm216, %v209, %v213
    %v218 = vand.u32 2147483647, %v159
    %vm219 = vcmp.eq.f32.partialorder %v218, 8.507059e+37
    %v220 = vand.u32 %v159, 2147483648
    %v221 = vor.u32 1.1754944e-38, %v220
    %v222 = vsel %vm219, %v221, %v217
    %v223 = vmul.f32 1.0, %v222
    %v224 = vrcp.pop %v160
    %v225 = vmul.f32 %v160, %v224
    %v226 = vsub.f32 1.0, %v225
    %v227 = vmul.f32 %v224, %v226
    %v228 = vadd.f32 %v224, %v227
    %vm229 = vweird.f32 %v160
    %vm230 = vweird.f32 %v224
    %vm231 = vmor %vm229, %vm230
    %v232 = vsel %vm231, %v224, %v228
    %v233 = vand.u32 2147483647, %v160
    %vm234 = vcmp.eq.f32.partialorder %v233, 8.507059e+37
    %v235 = vand.u32 %v160, 2147483648
    %v236 = vor.u32 1.1754944e-38, %v235
    %v237 = vsel %vm234, %v236, %v232
    %v238 = vmul.f32 1.0, %v237
    %v239 = vrcp.pop %v161
    %v240 = vmul.f32 %v161, %v239
    %v241 = vsub.f32 1.0, %v240
    %v242 = vmul.f32 %v239, %v241
    %v243 = vadd.f32 %v239, %v242
    %vm244 = vweird.f32 %v161
    %vm245 = vweird.f32 %v239
    %vm246 = vmor %vm244, %vm245
    %v247 = vsel %vm246, %v239, %v243
    %v248 = vand.u32 2147483647, %v161
    %vm249 = vcmp.eq.f32.partialorder %v248, 8.507059e+37
    %v250 = vand.u32 %v161, 2147483648
    %v251 = vor.u32 1.1754944e-38, %v250
    %v252 = vsel %vm249, %v251, %v247
    %v253 = vmul.f32 1.0, %v252
    %v254 = vrcp.pop %v162
    %v255 = vmul.f32 %v162, %v254
    %v256 = vsub.f32 1.0, %v255
    %v257 = vmul.f32 %v254, %v256
    %v258 = vadd.f32 %v254, %v257
    %vm259 = vweird.f32 %v162
    %vm260 = vweird.f32 %v254
    %vm261 = vmor %vm259, %vm260
    %v262 = vsel %vm261, %v254, %v258
    %v263 = vand.u32 2147483647, %v162
    %vm264 = vcmp.eq.f32.partialorder %v263, 8.507059e+37
    %v265 = vand.u32 %v162, 2147483648
    %v266 = vor.u32 1.1754944e-38, %v265
    %v267 = vsel %vm264, %v266, %v262
    %v268 = vmul.f32 1.0, %v267
    %v269 = vrcp.pop %v163
    %v270 = vmul.f32 %v163, %v269
    %v271 = vsub.f32 1.0, %v270
    %v272 = vmul.f32 %v269, %v271
    %v273 = vadd.f32 %v269, %v272
    %vm274 = vweird.f32 %v163
    %vm275 = vweird.f32 %v269
    %vm276 = vmor %vm274, %vm275
    %v277 = vsel %vm276, %v269, %v273
    %v278 = vand.u32 2147483647, %v163
    %vm279 = vcmp.eq.f32.partialorder %v278, 8.507059e+37
    %v280 = vand.u32 %v163, 2147483648
    %v281 = vor.u32 1.1754944e-38, %v280
    %v282 = vsel %vm279, %v281, %v277
    %v283 = vmul.f32 1.0, %v282
    %285 = vset.pattern.permute.xlu0 0
    %286 = vperm.xlu0 %285, %v178
    %v287 = vpop.permute.xlu0 %286
    %290 = vset.pattern.permute.xlu0 0
    %291 = vperm.xlu0 %290, %v193
    %v292 = vpop.permute.xlu0 %291
    %295 = vset.pattern.permute.xlu0 0
    %296 = vperm.xlu0 %295, %v208
    %v297 = vpop.permute.xlu0 %296
    %300 = vset.pattern.permute.xlu0 0
    %301 = vperm.xlu0 %300, %v223
    %v302 = vpop.permute.xlu0 %301
    %305 = vset.pattern.permute.xlu0 0
    %306 = vperm.xlu0 %305, %v238
    %v307 = vpop.permute.xlu0 %306
    %310 = vset.pattern.permute.xlu0 0
    %311 = vperm.xlu0 %310, %v253
    %v312 = vpop.permute.xlu0 %311
    %315 = vset.pattern.permute.xlu0 0
    %316 = vperm.xlu0 %315, %v268
    %v317 = vpop.permute.xlu0 %316
    %320 = vset.pattern.permute.xlu0 0
    %321 = vperm.xlu0 %320, %v283
    %v322 = vpop.permute.xlu0 %321
    %v324 = vmul.f32 %v47, %v287
    %v325 = vmul.f32 %v48, %v287
    %v326 = vmul.f32 %v49, %v292
    %v327 = vmul.f32 %v50, %v292
    %v328 = vmul.f32 %v51, %v297
    %v329 = vmul.f32 %v52, %v297
    %v330 = vmul.f32 %v53, %v302
    %v331 = vmul.f32 %v54, %v302
    %v332 = vmul.f32 %v55, %v307
    %v333 = vmul.f32 %v56, %v307
    %v334 = vmul.f32 %v57, %v312
    %v335 = vmul.f32 %v58, %v312
    %v336 = vmul.f32 %v59, %v317
    %v337 = vmul.f32 %v60, %v317
    %v338 = vmul.f32 %v61, %v322
    %v339 = vmul.f32 %v62, %v322
    %340 = vst [vmem:[#allocation7] sm:$0xff] %v324
    %341 = vst.msk [vmem:[#allocation7 + $0x8] sm:$0xff] %vm87, %v325
    %342 = vst [vmem:[#allocation7 + $0x10] sm:$0xff] %v326
    %343 = vst.msk [vmem:[#allocation7 + $0x18] sm:$0xff] %vm87, %v327
    %344 = vst [vmem:[#allocation7 + $0x20] sm:$0xff] %v328
    %345 = vst.msk [vmem:[#allocation7 + $0x28] sm:$0xff] %vm87, %v329
    %346 = vst [vmem:[#allocation7 + $0x30] sm:$0xff] %v330
    %347 = vst.msk [vmem:[#allocation7 + $0x38] sm:$0xff] %vm87, %v331
    %348 = vst [vmem:[#allocation7 + $0x40] sm:$0xff] %v332
    %349 = vst.msk [vmem:[#allocation7 + $0x48] sm:$0xff] %vm87, %v333
    %350 = vst [vmem:[#allocation7 + $0x50] sm:$0xff] %v334
    %351 = vst.msk [vmem:[#allocation7 + $0x58] sm:$0xff] %vm87, %v335
    %352 = vst [vmem:[#allocation7 + $0x60] sm:$0xff] %v336
    %353 = vst.msk [vmem:[#allocation7 + $0x68] sm:$0xff] %vm87, %v337
    %354 = vst [vmem:[#allocation7 + $0x70] sm:$0xff] %v338
    %355 = vst.msk [vmem:[#allocation7 + $0x78] sm:$0xff] %vm87, %v339
    // Predicated region
    $region22: #{tpu_custom_call.1} parent=1 // pred_check
      _
    $region23: #{tpu_custom_call.1} parent=1 // pred_check_branch
      %357 = sbr.rel (0) target = $region25
    $region24: #{tpu_custom_call.1} parent=1 // pred_region
      %359 = vsyncadd [#allocation4], 0
      %s360 = sshll.u32 [#allocation7], 4
      %s361 = int_to_ptr.vmem [resolvable:$true] %s360
      %s362 = sshll.u32 %s3, 4
      %s363 = int_to_ptr.hbm [resolvable:$true] %s362
      %368 = dma.vmem_to_hbm [thread:$0]  %s361, 2048, %s363, [#allocation4], 256, 256, 16
    $region25: #{tpu_custom_call.1} parent=1 // pred_fallthru
      _
    // Predicated region
    $region26: #{tpu_custom_call.1} parent=1 // pred_check
      _
    $region27: #{tpu_custom_call.1} parent=1 // pred_check_branch
      %370 = sbr.rel (0) target = $region29
    $region28: #{tpu_custom_call.1} parent=1 // pred_region
      %372 = dma.done [#allocation4], 2048
    $region29: #{tpu_custom_call.1} parent=1 // pred_fallthru
      _
    %373 = vsyncpa [#allocation3], 1
    %374 = vsyncpa [#allocation6], 1
    %375 = vsyncpa [#allocation4], 1

</llo_original>
